<compile_context>
chip_gen: v7x
topology: tpu7x:2x2x1
jax: 0.10.0
libtpu: 0.0.40
codegen_flags: <defaults>
</compile_context>

<pallas_src>
import jax
import jax.numpy as jnp
from jax.experimental import pallas as pl
from jax.experimental.pallas import tpu as pltpu


def _round_up(n, m):
    return ((n + m - 1) // m) * m


def _mlp_kernel(xT_ref, w1T_ref, b1_ref, w2_ref, b2_ref, oT_ref):
    # xT: (16, TB)  batch on lanes
    # w1T: (8, 16), b1: (8, 1), w2: (8, 1), b2: (1, 1)
    # Hidden layer on the MXU: (8,16) @ (16,TB) -> (8,TB), f32 accumulate.
    h = jnp.dot(w1T_ref[...], xT_ref[...], preferred_element_type=jnp.float32)
    h = jnp.maximum(h + b1_ref[...], 0.0)
    # Output layer as VPU multiply + 8-sublane reduce (avoids an N=1 MXU push).
    z = jnp.sum(w2_ref[...] * h, axis=0, keepdims=True) + b2_ref[...]  # (1, TB)
    oT_ref[...] = jax.nn.sigmoid(z).astype(oT_ref.dtype)


def simple_ann_forward(x, w1, b1, w2, b2, *, tile_b=1024):
    """x: (B, 16) f32; w1: (16, 8); b1: (8,); w2: (8, 1); b2: (1,) -> (B, 1) f32."""
    B = x.shape[0]
    # Lane-aligned batch tile, at most `tile_b` rows; pad the batch up to a
    # whole number of tiles (padded columns are computed then discarded).
    tb = min(tile_b, _round_up(B, 128))
    Bp = _round_up(B, tb)

    # Transposed (lane-dense) layout: batch on the last (128-lane) axis.
    xT = x.T                                             # (16, B)
    if Bp != B:
        xT = jnp.pad(xT, ((0, 0), (0, Bp - B)))
    w1T = w1.T                                           # (8, 16)
    b1c = b1.reshape(8, 1)
    b2c = b2.reshape(1, 1)

    grid = (Bp // tb,)
    oT = pl.pallas_call(
        _mlp_kernel,
        out_shape=jax.ShapeDtypeStruct((1, Bp), jnp.float32),
        grid_spec=pltpu.PrefetchScalarGridSpec(
            num_scalar_prefetch=0,
            grid=grid,
            in_specs=[
                pl.BlockSpec((16, tb), lambda i: (0, i)),  # streamed batch tile
                pl.BlockSpec((8, 16), lambda i: (0, 0)),   # resident weights/biases
                pl.BlockSpec((8, 1), lambda i: (0, 0)),
                pl.BlockSpec((8, 1), lambda i: (0, 0)),
                pl.BlockSpec((1, 1), lambda i: (0, 0)),
            ],
            out_specs=pl.BlockSpec((1, tb), lambda i: (0, i)),  # lane-dense store
        ),
        compiler_params=pltpu.CompilerParams(
            dimension_semantics=("parallel",),  # megacore sharding on v7x
            vmem_limit_bytes=32 << 20,
        ),
    )(xT, w1T, b1c, w2, b2c)

    # Back to the PyTorch-facing (B, 1) shape, dropping any batch padding.
    return oT[:, :B].T


def init_params(key):
    """Deterministic PyTorch-style (uniform +-1/sqrt(fan_in)) init."""
    k1, k2, k3, k4 = jax.random.split(key, 4)
    bound1 = 1.0 / jnp.sqrt(16.0)
    w1 = jax.random.uniform(k1, (16, 8), jnp.float32, -bound1, bound1)  # (in, out)
    b1 = jax.random.uniform(k2, (8,), jnp.float32, -bound1, bound1)
    bound2 = 1.0 / jnp.sqrt(8.0)
    w2 = jax.random.uniform(k3, (8, 1), jnp.float32, -bound2, bound2)   # (in, out)
    b2 = jax.random.uniform(k4, (1,), jnp.float32, -bound2, bound2)
    return w1, b1, w2, b2


if __name__ == "__main__":
    key = jax.random.PRNGKey(0)
    kx, kp = jax.random.split(key)
    w1, b1, w2, b2 = init_params(kp)

    def ref_forward(x):
        return jax.nn.sigmoid(jnp.maximum(x @ w1 + b1, 0.0) @ w2 + b2)

    # Small demo batch matching the module's 16-feature input.
    x_small = jax.random.normal(kx, (8, 16), jnp.float32)
    out_small = jax.block_until_ready(simple_ann_forward(x_small, w1, b1, w2, b2))
    assert out_small.shape == (8, 1)
    assert jnp.allclose(out_small, ref_forward(x_small), atol=1e-5), "mismatch (small)"

    # Multi-tile path: grid > 1 and a non-multiple-of-tile batch (exercises
    # pipelining across batch tiles and the padding/slice logic).
    x_big = jax.random.normal(kx, (300, 16), jnp.float32)
    out_big = jax.block_until_ready(
        simple_ann_forward(x_big, w1, b1, w2, b2, tile_b=128))
    assert out_big.shape == (300, 1)
    assert jnp.allclose(out_big, ref_forward(x_big), atol=1e-5), "mismatch (big)"

    # NOTE: for tiny batches (like B=8) a plain fused XLA graph is faster than
    # any pallas_call; a production wrapper would dispatch on batch size.
    print("KERNEL_OK")
</pallas_src>

<mosaic_0001>
module attributes {stable_mosaic.version = 11 : i64} {
  func.func @_mlp_kernel(%arg0: i32, %arg1: memref<16x128xf32, #tpu.memory_space<vmem>>, %arg2: memref<8x16xf32, #tpu.memory_space<vmem>>, %arg3: memref<8x1xf32, #tpu.memory_space<vmem>>, %arg4: memref<8x1xf32, #tpu.memory_space<vmem>>, %arg5: memref<1x1xf32, #tpu.memory_space<vmem>>, %arg6: memref<1x128xf32, #tpu.memory_space<vmem>>) attributes {dimension_semantics = [#tpu.dimension_semantics<parallel>], iteration_bounds = array<i64: 1>, scalar_prefetch = 0 : i64, scratch_operands = 0 : i64, tpu.core_type = #tpu.core_type<tc>, window_params = [{transform_indices = @transform_0, window_bounds = array<i64: 16, 128>}, {pipeline_mode = #tpu.pipeline_mode<synchronous>, transform_indices = @transform_1, window_bounds = array<i64: 8, 16>}, {pipeline_mode = #tpu.pipeline_mode<synchronous>, transform_indices = @transform_2, window_bounds = array<i64: 8, 1>}, {pipeline_mode = #tpu.pipeline_mode<synchronous>, transform_indices = @transform_3, window_bounds = array<i64: 8, 1>}, {pipeline_mode = #tpu.pipeline_mode<synchronous>, transform_indices = @transform_4, window_bounds = array<i64: 1, 1>}, {transform_indices = @transform_5, window_bounds = array<i64: 1, 128>}]} {
    %c0 = arith.constant 0 : index
    %c0_0 = arith.constant 0 : index
    %0 = vector.load %arg2[%c0, %c0_0] : memref<8x16xf32, #tpu.memory_space<vmem>>, vector<8x16xf32>
    %c0_1 = arith.constant 0 : index
    %c0_2 = arith.constant 0 : index
    %1 = vector.load %arg1[%c0_1, %c0_2] : memref<16x128xf32, #tpu.memory_space<vmem>>, vector<16x128xf32>
    %cst = arith.constant dense<0.000000e+00> : vector<8x128xf32>
    %2 = tpu.matmul %0, %1, %cst {dimension_numbers = #tpu.dot_dimension_numbers<[1], [0], [0], [1], [0, 0, 1, 1], [], []>} : vector<8x16xf32>, vector<16x128xf32>, vector<8x128xf32> -> vector<8x128xf32>
    %c0_3 = arith.constant 0 : index
    %c0_4 = arith.constant 0 : index
    %3 = vector.load %arg3[%c0_3, %c0_4] : memref<8x1xf32, #tpu.memory_space<vmem>>, vector<8x1xf32>
    %4 = vector.broadcast %3 : vector<8x1xf32> to vector<8x128xf32>
    %5 = arith.addf %2, %4 : vector<8x128xf32>
    %cst_5 = arith.constant 0.000000e+00 : f32
    %6 = vector.broadcast %cst_5 : f32 to vector<8x128xf32>
    %7 = arith.maximumf %5, %6 : vector<8x128xf32>
    %c0_6 = arith.constant 0 : index
    %c0_7 = arith.constant 0 : index
    %8 = vector.load %arg4[%c0_6, %c0_7] : memref<8x1xf32, #tpu.memory_space<vmem>>, vector<8x1xf32>
    %9 = vector.broadcast %8 : vector<8x1xf32> to vector<8x128xf32>
    %10 = arith.mulf %9, %7 : vector<8x128xf32>
    %cst_8 = arith.constant dense<0.000000e+00> : vector<128xf32>
    %11 = vector.multi_reduction <add>, %10, %cst_8 [0] : vector<8x128xf32> to vector<128xf32>
    %12 = vector.shape_cast %11 : vector<128xf32> to vector<1x128xf32>
    %c0_9 = arith.constant 0 : index
    %c0_10 = arith.constant 0 : index
    %13 = vector.load %arg5[%c0_9, %c0_10] : memref<1x1xf32, #tpu.memory_space<vmem>>, vector<1x1xf32>
    %14 = vector.broadcast %13 : vector<1x1xf32> to vector<1x128xf32>
    %15 = arith.addf %12, %14 : vector<1x128xf32>
    %16 = arith.negf %15 : vector<1x128xf32>
    %17 = math.exp %16 : vector<1x128xf32>
    %cst_11 = arith.constant 1.000000e+00 : f32
    %18 = vector.broadcast %cst_11 : f32 to vector<1x128xf32>
    %19 = arith.addf %18, %17 : vector<1x128xf32>
    %20 = arith.divf %18, %19 : vector<1x128xf32>
    %c0_12 = arith.constant 0 : index
    %c0_13 = arith.constant 0 : index
    %21 = vector.load %arg6[%c0_12, %c0_13] : memref<1x128xf32, #tpu.memory_space<vmem>>, vector<1x128xf32>
    tpu.vector_store %arg6[%c0_12, %c0_13], %20 {strides = array<i32>} : memref<1x128xf32, #tpu.memory_space<vmem>>, vector<1x128xf32>,
    return
  }
  func.func @transform_0(%arg0: i32) -> (i32, i32) {
    %c0_i32 = arith.constant 0 : i32
    %c0_i32_0 = arith.constant 0 : i32
    return %c0_i32, %arg0 : i32, i32
  }
  func.func @transform_1(%arg0: i32) -> (i32, i32) {
    %c0_i32 = arith.constant 0 : i32
    %c0_i32_0 = arith.constant 0 : i32
    %c0_i32_1 = arith.constant 0 : i32
    return %c0_i32, %c0_i32_0 : i32, i32
  }
  func.func @transform_2(%arg0: i32) -> (i32, i32) {
    %c0_i32 = arith.constant 0 : i32
    %c0_i32_0 = arith.constant 0 : i32
    %c0_i32_1 = arith.constant 0 : i32
    return %c0_i32, %c0_i32_0 : i32, i32
  }
  func.func @transform_3(%arg0: i32) -> (i32, i32) {
    %c0_i32 = arith.constant 0 : i32
    %c0_i32_0 = arith.constant 0 : i32
    %c0_i32_1 = arith.constant 0 : i32
    return %c0_i32, %c0_i32_0 : i32, i32
  }
  func.func @transform_4(%arg0: i32) -> (i32, i32) {
    %c0_i32 = arith.constant 0 : i32
    %c0_i32_0 = arith.constant 0 : i32
    %c0_i32_1 = arith.constant 0 : i32
    return %c0_i32, %c0_i32_0 : i32, i32
  }
  func.func @transform_5(%arg0: i32) -> (i32, i32) {
    %c0_i32 = arith.constant 0 : i32
    %c0_i32_0 = arith.constant 0 : i32
    return %c0_i32, %arg0 : i32, i32
  }
}

</mosaic_0001>

<llo_original>
// kernel: tpu_custom_call.1
$region0: #{tpu_custom_call.1}
  #allocation0 [shape = 'u32[]', space=smem, size = 0x4, offset = 0x4, fixed_abs, tag = 'smem constant byte address 0x4 - core index']
  #allocation1 [shape = 'u32[144,128]{1,0:T(1,128)}', space=vmem, size = 0x12000, scoped, tag = 'internal scratch']
  #allocation2 [shape = 'f32[1,1]{1,0:T(1,128)S(1)}', space=vmem, size = 0x200, scoped, tag = 'scoped memory for tpu_custom_call.1']
  %s0 = inlined_call_operand.vmem [shape: f32[16,128], index: 0, kind: input, shape index: {}]
  %s1 = inlined_call_operand.vmem [shape: f32[8,16], index: 1, kind: input, shape index: {}]
  %s2 = inlined_call_operand.vmem [shape: f32[8,1], index: 2, kind: input, shape index: {}]
  %s3 = inlined_call_operand.vmem [shape: f32[8,1], index: 3, kind: input, shape index: {}]
  %s4 = inlined_call_operand.<no memory space> [shape: f32[1,1], index: 4, kind: input, shape index: {}]
  %s5 = inlined_call_operand.hbm [shape: f32[1,128], index: 5, kind: output, shape index: {}]
  %s6 = sld [smem:[#allocation0]]
  $region30: #{tpu_custom_call.1} parent=0
    _
  %s8 = ssub.s32 1, %s6
  %s9 = scalar_select 0, %s8, %s6
  %v10 = vstv %s4
  %11 = vst [vmem:[#allocation2] sm:$0x1] %v10
  $region1: #{tpu_custom_call.1} parent=0
    #allocation3 [shape = 'u8[512]{0}', space=vmem, size = 0x400, scoped, tag = 'output window, operand 0, single buffered']
    #allocation4 [shape = 's32[1]{0}', space=sflag, size = 0x4, scoped, tag = 'scoped memory for tpu_custom_call.1']
    %12 = vsyncpa [#allocation4], 0
    // Predicated region
    $region2: #{tpu_custom_call.1} parent=1 // pred_check
      _
    $region3: #{tpu_custom_call.1} parent=1 // pred_check_branch
      %14 = sbr.rel (0) target = $region5
    $region4: #{tpu_custom_call.1} parent=1 // pred_region
      _
    $region5: #{tpu_custom_call.1} parent=1 // pred_fallthru
      _
    // Predicated region
    $region6: #{tpu_custom_call.1} parent=1 // pred_check
      _
    $region7: #{tpu_custom_call.1} parent=1 // pred_check_branch
      %16 = sbr.rel (0) target = $region9
    $region8: #{tpu_custom_call.1} parent=1 // pred_region
      _
    $region9: #{tpu_custom_call.1} parent=1 // pred_fallthru
      _
    // Predicated region
    $region10: #{tpu_custom_call.1} parent=1 // pred_check
      _
    $region11: #{tpu_custom_call.1} parent=1 // pred_check_branch
      %18 = sbr.rel (0) target = $region13
    $region12: #{tpu_custom_call.1} parent=1 // pred_region
      _
    $region13: #{tpu_custom_call.1} parent=1 // pred_fallthru
      _
    // Predicated region
    $region14: #{tpu_custom_call.1} parent=1 // pred_check
      _
    $region15: #{tpu_custom_call.1} parent=1 // pred_check_branch
      %20 = sbr.rel (0) target = $region17
    $region16: #{tpu_custom_call.1} parent=1 // pred_region
      _
    $region17: #{tpu_custom_call.1} parent=1 // pred_fallthru
      _
    // Predicated region
    $region18: #{tpu_custom_call.1} parent=1 // pred_check
      _
    $region19: #{tpu_custom_call.1} parent=1 // pred_check_branch
      %22 = sbr.rel (0) target = $region21
    $region20: #{tpu_custom_call.1} parent=1 // pred_region
      _
    $region21: #{tpu_custom_call.1} parent=1 // pred_fallthru
      _
    %v23 = vld [vmem:[%s1] sm:$0xff]
    %v24 = vld [vmem:[%s0] sm:$0xff]
    %v25 = vld [vmem:[%s0 + $0x8] sm:$0xff]
    %v26 = vld [vmem:[%s2] sm:$0xff]
    %28 = vset.pattern.permute.xlu0 0
    %29 = vperm.xlu0 %28, %v26
    %v30 = vpop.permute.xlu0 %29
    %vm32 = vcmask 130048
    %v34 = vsel %vm32, %v23, 0
    %36 = vmatprep.subr.mxu0 0.0
    %37 = vmatpush1.msra.mxu0 %v24
    %38 = vmatprep.subr.mxu0 0.0
    %39 = vmatpush1.msra.mxu0 %v25
    %40 = vmatprep.subr.mxu0 0.0
    %41 = vmatpush1.msra.mxu0 0.0
    %42 = vmatprep.subr.mxu0 0.0
    %43 = vmatpush1.msra.mxu0 0.0
    %44 = vmatprep.subr.mxu0 0.0
    %45 = vmatpush1.msra.mxu0 0.0
    %46 = vmatprep.subr.mxu0 0.0
    %47 = vmatpush1.msra.mxu0 0.0
    %48 = vmatprep.subr.mxu0 0.0
    %49 = vmatpush1.msra.mxu0 0.0
    %50 = vmatprep.subr.mxu0 0.0
    %51 = vmatpush1.msra.mxu0 0.0
    %52 = vmatprep.subr.mxu0 0.0
    %53 = vmatpush1.msra.mxu0 0.0
    %54 = vmatprep.subr.mxu0 0.0
    %55 = vmatpush1.msra.mxu0 0.0
    %56 = vmatprep.subr.mxu0 0.0
    %57 = vmatpush1.msra.mxu0 0.0
    %58 = vmatprep.subr.mxu0 0.0
    %59 = vmatpush1.msra.mxu0 0.0
    %60 = vmatprep.subr.mxu0 0.0
    %61 = vmatpush1.msra.mxu0 0.0
    %62 = vmatprep.subr.mxu0 0.0
    %63 = vmatpush1.msra.mxu0 0.0
    %64 = vmatprep.subr.mxu0 0.0
    %65 = vmatpush1.msra.mxu0 0.0
    %66 = vmatprep.subr.mxu0 0.0
    %67 = vmatpush1.msra.mxu0 0.0
    %68 = vmatprep.subr.mxu0 0.0
    %69 = vmatpush1.msra.mxu0 0.0
    %70 = vmatprep.subr.mxu0 0.0
    %71 = vmatpush1.msra.mxu0 0.0
    %72 = vmatprep.subr.mxu0 0.0
    %73 = vmatpush1.msra.mxu0 0.0
    %74 = vmatprep.subr.mxu0 0.0
    %75 = vmatpush1.msra.mxu0 0.0
    %76 = vmatprep.subr.mxu0 0.0
    %77 = vmatpush1.msra.mxu0 0.0
    %78 = vmatprep.subr.mxu0 0.0
    %79 = vmatpush1.msra.mxu0 0.0
    %80 = vmatprep.subr.mxu0 0.0
    %81 = vmatpush1.msra.mxu0 0.0
    %82 = vmatprep.subr.mxu0 0.0
    %83 = vmatpush1.msra.mxu0 0.0
    %84 = vmatprep.subr.mxu0 0.0
    %85 = vmatpush1.msra.mxu0 0.0
    %86 = vmatprep.subr.mxu0 0.0
    %87 = vmatpush1.msra.mxu0 0.0
    %88 = vmatprep.subr.mxu0 0.0
    %89 = vmatpush1.msra.mxu0 0.0
    %90 = vmatprep.subr.mxu0 0.0
    %91 = vmatpush1.msra.mxu0 0.0
    %92 = vmatprep.subr.mxu0 0.0
    %93 = vmatpush1.msra.mxu0 0.0
    %94 = vmatprep.subr.mxu0 0.0
    %95 = vmatpush1.msra.mxu0 0.0
    %96 = vmatprep.subr.mxu0 0.0
    %97 = vmatpush1.msra.mxu0 0.0
    %98 = vmatprep.subr.mxu0 0.0
    %99 = vmatpush1.msra.mxu0 0.0
    %100 = vmatprep.mubr.f32.mxu0 0.0
    %101 = vmatmul.mubr.f32.gmra.mrb[0].mxu0 %v34
    %v102 = vpop.f32.mrb[0].mxu0
    %v103 = vadd.f32 %v30, %v102
    %v104 = vpop.f32.mrb[0].mxu0
    %105 = vdwg.mxu0
    %v106 = vmax.f32 %v103, 0.0
    %v107 = vld [vmem:[%s3] sm:$0xff]
    %109 = vset.pattern.permute.xlu0 0
    %110 = vperm.xlu0 %109, %v107
    %v111 = vpop.permute.xlu0 %110
    %v113 = vmul.f32 %v111, %v106
    %v114 = vrot.slane %v113, 4
    %v115 = vadd.f32 %v113, %v114
    %v116 = vrot.slane %v115, 2
    %v117 = vadd.f32 %v115, %v116
    %v118 = vrot.slane %v117, 1
    %v119 = vadd.f32 %v117, %v118
    %v120 = vld [vmem:[#allocation2] sm:$0x1]
    %122 = vset.pattern.permute.xlu0 0
    %123 = vperm.xlu0 %122, %v120
    %v124 = vpop.permute.xlu0 %123
    %v126 = vlaneseq
    %v127 = vshrl.u32 %v126, 7
    %v128 = vsub.s32 0, %v127
    %v129 = vrot.slane %v124, %v128
    %v130 = vadd.f32 %v119, %v129
    %v131 = vxor.u32 %v130, 2147483648
    %v132 = vmul.f32 %v131, 1.442695
    %v133 = vpow.pop %v132
    %v134 = vadd.f32 %v133, 1.0
    %v135 = vrcp.pop %v134
    %v136 = vmul.f32 1.0, %v135
    %137 = vst [vmem:[#allocation3] sm:$0x1] %v136
    // Predicated region
    $region22: #{tpu_custom_call.1} parent=1 // pred_check
      _
    $region23: #{tpu_custom_call.1} parent=1 // pred_check_branch
      %139 = sbr.rel (0) target = $region25
    $region24: #{tpu_custom_call.1} parent=1 // pred_region
      %s141 = ssub.s32 16, 16
      %142 = vsyncadd [#allocation4], %s141
      %s144 = sshll.u32 [#allocation3], 4
      %s145 = int_to_ptr.vmem [resolvable:$true] %s144
      %147 = dma.vmem_to_hbm [thread:$0]  %s145, 16, %s5, [#allocation4]
    $region25: #{tpu_custom_call.1} parent=1 // pred_fallthru
      _
    // Predicated region
    $region26: #{tpu_custom_call.1} parent=1 // pred_check
      _
    $region27: #{tpu_custom_call.1} parent=1 // pred_check_branch
      %149 = sbr.rel (0) target = $region29
    $region28: #{tpu_custom_call.1} parent=1 // pred_region
      %150 = dma.done [#allocation4], 16
    $region29: #{tpu_custom_call.1} parent=1 // pred_fallthru
      _
    %151 = vsyncpa [#allocation4], 1

</llo_original>
